<compile_context>
chip_gen: v6e
topology: v6e:2x2x1
jax: 0.10.0
libtpu: 0.0.40
codegen_flags: <defaults>
</compile_context>

<pallas_src>
import jax
import jax.numpy as jnp
from jax.experimental import pallas as pl
from jax.experimental.pallas import tpu as pltpu


def _round_up(x: int, m: int) -> int:
    return ((x + m - 1) // m) * m


def _patch_matmul_kernel(x_ref, w_ref, b_ref, o_ref):
    # x_ref: (tm, K) patch rows; w_ref: (K, N_pad); b_ref: (1, N_pad);
    # o_ref: (tm, N_pad).  N_pad is a multiple of 128, so the store below is a
    # full-lane (unmasked) vst.
    acc = jnp.dot(x_ref[...], w_ref[...], preferred_element_type=jnp.float32)
    o_ref[...] = (acc + b_ref[...]).astype(o_ref.dtype)


def patch_merging_3d(x, weight, bias, *, tm=512):
    """Conv3d(in_ch, out_ch, kernel_size=2, stride=2) forward.

    x:      (B, C_in, D, H, W)   float32
    weight: (C_out, C_in, 2, 2, 2)
    bias:   (C_out,)
    returns (B, C_out, D//2, H//2, W//2)
    """
    B, C_in, D, H, W = x.shape
    C_out = weight.shape[0]
    assert D % 2 == 0 and H % 2 == 0 and W % 2 == 0

    Dd, Hh, Ww = D // 2, H // 2, W // 2
    K = C_in * 8
    M = B * Dd * Hh * Ww
    N_pad = _round_up(C_out, 128)          # lane-dense output width

    # --- glue (XLA): im2col — rearrange into 2x2x2 patch rows (M, K) ---
    # (B, C, Dd, 2, Hh, 2, Ww, 2) -> (B, Dd, Hh, Ww, C, 2, 2, 2) -> (M, K)
    xp = x.reshape(B, C_in, Dd, 2, Hh, 2, Ww, 2)
    xp = xp.transpose(0, 2, 4, 6, 1, 3, 5, 7).reshape(M, K)

    # weight (C_out, C_in, 2, 2, 2) -> (K, N_pad); matches the (C, kd, kh, kw)
    # ordering of the patch rows above.  Pad N to the lane-dense width.
    w_mat = weight.reshape(C_out, K).T
    w_mat = jnp.pad(w_mat, ((0, 0), (0, N_pad - C_out)))
    b_row = jnp.pad(bias.reshape(1, C_out), ((0, 0), (0, N_pad - C_out)))

    # --- tile selection: largest tm (multiple of 128) that fits a VMEM budget
    # conservative enough for v7x (64 MiB physical / 32 MiB scoped default).
    # x/out blocks are double-buffered by Pallas; weight/bias stay resident.
    def _block_bytes(t):
        return 4 * (2 * t * K + 2 * t * N_pad + K * N_pad + N_pad)

    _VMEM_BLOCK_BUDGET = 24 * 1024 * 1024
    tm = max(128, min(tm, _round_up(M, 128)))
    while tm > 128 and _block_bytes(tm) > _VMEM_BLOCK_BUDGET:
        tm -= 128
    # NOTE(v7x): if K = 8*C_in ever gets large enough that even tm=128 blows
    # the budget, add a K grid axis marked "arbitrary" with an f32 VMEM
    # accumulator instead of shrinking tm further.

    M_pad = _round_up(M, tm)
    if M_pad != M:
        xp = jnp.pad(xp, ((0, M_pad - M), (0, 0)))
    grid_m = M_pad // tm

    # Raise the scoped VMEM limit to cover the chosen blocks (plus headroom),
    # capped well below v7x's 64 MiB physical VMEM.
    vmem_limit = min(max(2 * _block_bytes(tm) + (2 << 20), 32 << 20), 56 << 20)

    out_mat = pl.pallas_call(
        _patch_matmul_kernel,
        out_shape=jax.ShapeDtypeStruct((M_pad, N_pad), x.dtype),
        grid_spec=pltpu.PrefetchScalarGridSpec(
            num_scalar_prefetch=0,
            grid=(grid_m,),
            in_specs=[
                # Streaming operand: (tm, K) patch rows.  K equals the full
                # array dim, so the (8,128) block constraint is satisfied.
                pl.BlockSpec((tm, K), lambda i: (i, 0)),
                # Grid-invariant, resident weight / bias blocks.
                pl.BlockSpec((K, N_pad), lambda i: (0, 0)),
                pl.BlockSpec((1, N_pad), lambda i: (0, 0)),
            ],
            out_specs=pl.BlockSpec((tm, N_pad), lambda i: (i, 0)),
        ),
        compiler_params=pltpu.CompilerParams(
            dimension_semantics=("parallel",),
            vmem_limit_bytes=vmem_limit,
        ),
    )(xp, w_mat, b_row)

    # --- glue (XLA): drop padding, back to NCDHW ---
    out_mat = out_mat[:M, :C_out]
    out = out_mat.reshape(B, Dd, Hh, Ww, C_out).transpose(0, 4, 1, 2, 3)
    return out


def _reference_conv3d(x, weight, bias):
    # plain-JAX reference for correctness check (NCDHW / OIDHW)
    out = jax.lax.conv_general_dilated(
        x, weight,
        window_strides=(2, 2, 2),
        padding="VALID",
        dimension_numbers=("NCDHW", "OIDHW", "NCDHW"),
    )
    return out + bias.reshape(1, -1, 1, 1, 1)


if __name__ == "__main__":
    key = jax.random.PRNGKey(0)
    kx, kw, kb = jax.random.split(key, 3)

    B, C_in, C_out = 2, 4, 8
    D = H = W = 8

    x = jax.random.normal(kx, (B, C_in, D, H, W), dtype=jnp.float32)
    # deterministic init mimicking Conv3d default (uniform in +-1/sqrt(fan_in))
    fan_in = C_in * 2 * 2 * 2
    bound = 1.0 / (fan_in ** 0.5)
    weight = jax.random.uniform(kw, (C_out, C_in, 2, 2, 2),
                                minval=-bound, maxval=bound, dtype=jnp.float32)
    bias = jax.random.uniform(kb, (C_out,), minval=-bound, maxval=bound,
                              dtype=jnp.float32)

    out = patch_merging_3d(x, weight, bias)
    out = jax.block_until_ready(out)

    ref = _reference_conv3d(x, weight, bias)
    assert out.shape == (B, C_out, D // 2, H // 2, W // 2)
    assert jnp.allclose(out, ref, atol=1e-4, rtol=1e-4)

    print("KERNEL_OK")
</pallas_src>

<mosaic_0001>
module attributes {stable_mosaic.version = 11 : i64} {
  func.func @_patch_matmul_kernel(%arg0: i32, %arg1: memref<128x32xf32, #tpu.memory_space<vmem>>, %arg2: memref<32x128xf32, #tpu.memory_space<vmem>>, %arg3: memref<1x128xf32, #tpu.memory_space<vmem>>, %arg4: memref<128x128xf32, #tpu.memory_space<vmem>>) attributes {dimension_semantics = [#tpu.dimension_semantics<parallel>], iteration_bounds = array<i64: 1>, scalar_prefetch = 0 : i64, scratch_operands = 0 : i64, tpu.core_type = #tpu.core_type<tc>, window_params = [{transform_indices = @transform_0, window_bounds = array<i64: 128, 32>}, {pipeline_mode = #tpu.pipeline_mode<synchronous>, transform_indices = @transform_1, window_bounds = array<i64: 32, 128>}, {pipeline_mode = #tpu.pipeline_mode<synchronous>, transform_indices = @transform_2, window_bounds = array<i64: 1, 128>}, {transform_indices = @transform_3, window_bounds = array<i64: 128, 128>}]} {
    %c0 = arith.constant 0 : index
    %c0_0 = arith.constant 0 : index
    %0 = vector.load %arg1[%c0, %c0_0] : memref<128x32xf32, #tpu.memory_space<vmem>>, vector<128x32xf32>
    %c0_1 = arith.constant 0 : index
    %c0_2 = arith.constant 0 : index
    %1 = vector.load %arg2[%c0_1, %c0_2] : memref<32x128xf32, #tpu.memory_space<vmem>>, vector<32x128xf32>
    %cst = arith.constant dense<0.000000e+00> : vector<128x128xf32>
    %2 = tpu.matmul %0, %1, %cst {dimension_numbers = #tpu.dot_dimension_numbers<[1], [0], [0], [1], [0, 0, 1, 1], [], []>} : vector<128x32xf32>, vector<32x128xf32>, vector<128x128xf32> -> vector<128x128xf32>
    %c0_3 = arith.constant 0 : index
    %c0_4 = arith.constant 0 : index
    %3 = vector.load %arg3[%c0_3, %c0_4] : memref<1x128xf32, #tpu.memory_space<vmem>>, vector<1x128xf32>
    %4 = vector.broadcast %3 : vector<1x128xf32> to vector<128x128xf32>
    %5 = arith.addf %2, %4 : vector<128x128xf32>
    %c0_5 = arith.constant 0 : index
    %c0_6 = arith.constant 0 : index
    %6 = vector.load %arg4[%c0_5, %c0_6] : memref<128x128xf32, #tpu.memory_space<vmem>>, vector<128x128xf32>
    tpu.vector_store %arg4[%c0_5, %c0_6], %5 {strides = array<i32>} : memref<128x128xf32, #tpu.memory_space<vmem>>, vector<128x128xf32>,
    return
  }
  func.func @transform_0(%arg0: i32) -> (i32, i32) {
    %c0_i32 = arith.constant 0 : i32
    %c0_i32_0 = arith.constant 0 : i32
    return %arg0, %c0_i32 : i32, i32
  }
  func.func @transform_1(%arg0: i32) -> (i32, i32) {
    %c0_i32 = arith.constant 0 : i32
    %c0_i32_0 = arith.constant 0 : i32
    %c0_i32_1 = arith.constant 0 : i32
    return %c0_i32, %c0_i32_0 : i32, i32
  }
  func.func @transform_2(%arg0: i32) -> (i32, i32) {
    %c0_i32 = arith.constant 0 : i32
    %c0_i32_0 = arith.constant 0 : i32
    %c0_i32_1 = arith.constant 0 : i32
    return %c0_i32, %c0_i32_0 : i32, i32
  }
  func.func @transform_3(%arg0: i32) -> (i32, i32) {
    %c0_i32 = arith.constant 0 : i32
    %c0_i32_0 = arith.constant 0 : i32
    return %arg0, %c0_i32 : i32, i32
  }
}

</mosaic_0001>

<llo_original>
// kernel: tpu_custom_call.1
$region0: #{tpu_custom_call.1}
  #allocation0 [shape = 'u32[]', space=smem, size = 0x4, offset = 0x4, fixed_abs, tag = 'smem constant byte address 0x4 - core index']
  #allocation1 [shape = 'u32[144,128]{1,0:T(1,128)}', space=vmem, size = 0x12000, scoped, tag = 'internal scratch']
  %s0 = inlined_call_operand.vmem [shape: f32[128,32], index: 0, kind: input, shape index: {}]
  %s1 = inlined_call_operand.vmem [shape: f32[32,128], index: 1, kind: input, shape index: {}]
  %s2 = inlined_call_operand.vmem [shape: f32[1,128], index: 2, kind: input, shape index: {}]
  %s3 = inlined_call_operand.hbm [shape: f32[128,128], index: 3, kind: output, shape index: {}]
  %s4 = sld [smem:[#allocation0]]
  $region22: #{tpu_custom_call.1} parent=0
    _
  %s6 = ssub.s32 1, %s4
  %s7 = scalar_select 0, %s6, %s4
  $region1: #{tpu_custom_call.1} parent=0
    #allocation2 [shape = 'u8[65536]{0}', space=vmem, size = 0x10000, scoped, tag = 'output window, operand 0, single buffered']
    #allocation3 [shape = 's32[1]{0}', space=sflag, size = 0x4, scoped, tag = 'scoped memory for tpu_custom_call.1']
    %8 = vsyncpa [#allocation3], 0
    // Predicated region
    $region2: #{tpu_custom_call.1} parent=1 // pred_check
      _
    $region3: #{tpu_custom_call.1} parent=1 // pred_check_branch
      %10 = sbr.rel (0) target = $region5
    $region4: #{tpu_custom_call.1} parent=1 // pred_region
      _
    $region5: #{tpu_custom_call.1} parent=1 // pred_fallthru
      _
    // Predicated region
    $region6: #{tpu_custom_call.1} parent=1 // pred_check
      _
    $region7: #{tpu_custom_call.1} parent=1 // pred_check_branch
      %12 = sbr.rel (0) target = $region9
    $region8: #{tpu_custom_call.1} parent=1 // pred_region
      _
    $region9: #{tpu_custom_call.1} parent=1 // pred_fallthru
      _
    // Predicated region
    $region10: #{tpu_custom_call.1} parent=1 // pred_check
      _
    $region11: #{tpu_custom_call.1} parent=1 // pred_check_branch
      %14 = sbr.rel (0) target = $region13
    $region12: #{tpu_custom_call.1} parent=1 // pred_region
      _
    $region13: #{tpu_custom_call.1} parent=1 // pred_fallthru
      _
    %v15 = vld [vmem:[%s0] sm:$0xff]
    %v16 = vld [vmem:[%s0 + $0x8] sm:$0xff]
    %v17 = vld [vmem:[%s0 + $0x10] sm:$0xff]
    %v18 = vld [vmem:[%s0 + $0x18] sm:$0xff]
    %v19 = vld [vmem:[%s0 + $0x20] sm:$0xff]
    %v20 = vld [vmem:[%s0 + $0x28] sm:$0xff]
    %v21 = vld [vmem:[%s0 + $0x30] sm:$0xff]
    %v22 = vld [vmem:[%s0 + $0x38] sm:$0xff]
    %v23 = vld [vmem:[%s0 + $0x40] sm:$0xff]
    %v24 = vld [vmem:[%s0 + $0x48] sm:$0xff]
    %v25 = vld [vmem:[%s0 + $0x50] sm:$0xff]
    %v26 = vld [vmem:[%s0 + $0x58] sm:$0xff]
    %v27 = vld [vmem:[%s0 + $0x60] sm:$0xff]
    %v28 = vld [vmem:[%s0 + $0x68] sm:$0xff]
    %v29 = vld [vmem:[%s0 + $0x70] sm:$0xff]
    %v30 = vld [vmem:[%s0 + $0x78] sm:$0xff]
    %v31 = vld [vmem:[%s1] sm:$0xff]
    %v32 = vld [vmem:[%s1 + $0x8] sm:$0xff]
    %v33 = vld [vmem:[%s1 + $0x10] sm:$0xff]
    %v34 = vld [vmem:[%s1 + $0x18] sm:$0xff]
    %v35 = vld [vmem:[%s2] sm:$0x1]
    %v37 = vlaneseq
    %v38 = vshrl.u32 %v37, 7
    %v39 = vsub.s32 0, %v38
    %v40 = vrot.slane %v35, %v39
    %vm42 = vcmask 261120
    %v44 = vsel %vm42, %v15, 0
    %v47 = vsel %vm42, %v16, 0
    %v50 = vsel %vm42, %v17, 0
    %v53 = vsel %vm42, %v18, 0
    %v56 = vsel %vm42, %v19, 0
    %v59 = vsel %vm42, %v20, 0
    %v62 = vsel %vm42, %v21, 0
    %v65 = vsel %vm42, %v22, 0
    %v68 = vsel %vm42, %v23, 0
    %v71 = vsel %vm42, %v24, 0
    %v74 = vsel %vm42, %v25, 0
    %v77 = vsel %vm42, %v26, 0
    %v80 = vsel %vm42, %v27, 0
    %v83 = vsel %vm42, %v28, 0
    %v86 = vsel %vm42, %v29, 0
    %v89 = vsel %vm42, %v30, 0
    %91 = vmatprep.subr.mxu0 0.0
    %92 = vmatpush1.msra.mxu0 0.0
    %93 = vmatprep.subr.mxu0 0.0
    %94 = vmatpush1.msra.mxu0 0.0
    %95 = vmatprep.subr.mxu0 0.0
    %96 = vmatpush1.msra.mxu0 0.0
    %97 = vmatprep.subr.mxu0 0.0
    %98 = vmatpush1.msra.mxu0 0.0
    %99 = vmatprep.subr.mxu0 0.0
    %100 = vmatpush1.msra.mxu0 0.0
    %101 = vmatprep.subr.mxu0 0.0
    %102 = vmatpush1.msra.mxu0 0.0
    %103 = vmatprep.subr.mxu0 0.0
    %104 = vmatpush1.msra.mxu0 0.0
    %105 = vmatprep.subr.mxu0 0.0
    %106 = vmatpush1.msra.mxu0 0.0
    %107 = vmatprep.subr.mxu0 0.0
    %108 = vmatpush1.msra.mxu0 0.0
    %109 = vmatprep.subr.mxu0 0.0
    %110 = vmatpush1.msra.mxu0 0.0
    %111 = vmatprep.subr.mxu0 0.0
    %112 = vmatpush1.msra.mxu0 0.0
    %113 = vmatprep.subr.mxu0 0.0
    %114 = vmatpush1.msra.mxu0 0.0
    %115 = vmatprep.subr.mxu0 0.0
    %116 = vmatpush1.msra.mxu0 %v34
    %117 = vmatprep.subr.mxu0 0.0
    %118 = vmatpush1.msra.mxu0 %v33
    %119 = vmatprep.subr.mxu0 0.0
    %120 = vmatpush1.msra.mxu0 %v32
    %121 = vmatprep.subr.mxu0 0.0
    %122 = vmatpush1.msra.mxu0 %v31
    %123 = vmatprep.subr.mxu0 0.0
    %124 = vmatpush2.msra.mxu0 0.0
    %125 = vmatprep.subr.mxu0 0.0
    %126 = vmatpush2.msra.mxu0 0.0
    %127 = vmatprep.subr.mxu0 0.0
    %128 = vmatpush2.msra.mxu0 0.0
    %129 = vmatprep.subr.mxu0 0.0
    %130 = vmatpush2.msra.mxu0 0.0
    %131 = vmatprep.subr.mxu0 0.0
    %132 = vmatpush2.msra.mxu0 0.0
    %133 = vmatprep.subr.mxu0 0.0
    %134 = vmatpush2.msra.mxu0 0.0
    %135 = vmatprep.subr.mxu0 0.0
    %136 = vmatpush2.msra.mxu0 0.0
    %137 = vmatprep.subr.mxu0 0.0
    %138 = vmatpush2.msra.mxu0 0.0
    %139 = vmatprep.subr.mxu0 0.0
    %140 = vmatpush2.msra.mxu0 0.0
    %141 = vmatprep.subr.mxu0 0.0
    %142 = vmatpush2.msra.mxu0 0.0
    %143 = vmatprep.subr.mxu0 0.0
    %144 = vmatpush2.msra.mxu0 0.0
    %145 = vmatprep.subr.mxu0 0.0
    %146 = vmatpush2.msra.mxu0 0.0
    %147 = vmatprep.subr.mxu0 0.0
    %148 = vmatpush2.msra.mxu0 0.0
    %149 = vmatprep.subr.mxu0 0.0
    %150 = vmatpush2.msra.mxu0 0.0
    %151 = vmatprep.subr.mxu0 0.0
    %152 = vmatpush2.msra.mxu0 0.0
    %153 = vmatprep.subr.mxu0 0.0
    %154 = vmatpush2.msra.mxu0 0.0
    %155 = vmatprep.mubr.f32.mxu0 0.0
    %156 = vmatmul.mubr.f32.gmra.mxu0 %v44
    %v157 = vpop.f32.mrf.mxu0
    %v158 = vadd.f32 %v40, %v157
    %v159 = vpop.f32.mrf.mxu0
    %160 = vmatprep.mubr.f32.mxu0 0.0
    %161 = vmatmul.mubr.f32.gmra.mxu0 %v47
    %v162 = vpop.f32.mrf.mxu0
    %v163 = vadd.f32 %v40, %v162
    %v164 = vpop.f32.mrf.mxu0
    %165 = vmatprep.mubr.f32.mxu0 0.0
    %166 = vmatmul.mubr.f32.gmra.mxu0 %v50
    %v167 = vpop.f32.mrf.mxu0
    %v168 = vadd.f32 %v40, %v167
    %v169 = vpop.f32.mrf.mxu0
    %170 = vmatprep.mubr.f32.mxu0 0.0
    %171 = vmatmul.mubr.f32.gmra.mxu0 %v53
    %v172 = vpop.f32.mrf.mxu0
    %v173 = vadd.f32 %v40, %v172
    %v174 = vpop.f32.mrf.mxu0
    %175 = vmatprep.mubr.f32.mxu0 0.0
    %176 = vmatmul.mubr.f32.gmra.mxu0 %v56
    %v177 = vpop.f32.mrf.mxu0
    %v178 = vadd.f32 %v40, %v177
    %v179 = vpop.f32.mrf.mxu0
    %180 = vmatprep.mubr.f32.mxu0 0.0
    %181 = vmatmul.mubr.f32.gmra.mxu0 %v59
    %v182 = vpop.f32.mrf.mxu0
    %v183 = vadd.f32 %v40, %v182
    %v184 = vpop.f32.mrf.mxu0
    %185 = vmatprep.mubr.f32.mxu0 0.0
    %186 = vmatmul.mubr.f32.gmra.mxu0 %v62
    %v187 = vpop.f32.mrf.mxu0
    %v188 = vadd.f32 %v40, %v187
    %v189 = vpop.f32.mrf.mxu0
    %190 = vmatprep.mubr.f32.mxu0 0.0
    %191 = vmatmul.mubr.f32.gmra.mxu0 %v65
    %v192 = vpop.f32.mrf.mxu0
    %v193 = vadd.f32 %v40, %v192
    %v194 = vpop.f32.mrf.mxu0
    %195 = vmatprep.mubr.f32.mxu0 0.0
    %196 = vmatmul.mubr.f32.gmra.mxu0 %v68
    %v197 = vpop.f32.mrf.mxu0
    %v198 = vadd.f32 %v40, %v197
    %v199 = vpop.f32.mrf.mxu0
    %200 = vmatprep.mubr.f32.mxu0 0.0
    %201 = vmatmul.mubr.f32.gmra.mxu0 %v71
    %v202 = vpop.f32.mrf.mxu0
    %v203 = vadd.f32 %v40, %v202
    %v204 = vpop.f32.mrf.mxu0
    %205 = vmatprep.mubr.f32.mxu0 0.0
    %206 = vmatmul.mubr.f32.gmra.mxu0 %v74
    %v207 = vpop.f32.mrf.mxu0
    %v208 = vadd.f32 %v40, %v207
    %v209 = vpop.f32.mrf.mxu0
    %210 = vmatprep.mubr.f32.mxu0 0.0
    %211 = vmatmul.mubr.f32.gmra.mxu0 %v77
    %v212 = vpop.f32.mrf.mxu0
    %v213 = vadd.f32 %v40, %v212
    %v214 = vpop.f32.mrf.mxu0
    %215 = vmatprep.mubr.f32.mxu0 0.0
    %216 = vmatmul.mubr.f32.gmra.mxu0 %v80
    %v217 = vpop.f32.mrf.mxu0
    %v218 = vadd.f32 %v40, %v217
    %v219 = vpop.f32.mrf.mxu0
    %220 = vmatprep.mubr.f32.mxu0 0.0
    %221 = vmatmul.mubr.f32.gmra.mxu0 %v83
    %v222 = vpop.f32.mrf.mxu0
    %v223 = vadd.f32 %v40, %v222
    %v224 = vpop.f32.mrf.mxu0
    %225 = vmatprep.mubr.f32.mxu0 0.0
    %226 = vmatmul.mubr.f32.gmra.mxu0 %v86
    %v227 = vpop.f32.mrf.mxu0
    %v228 = vadd.f32 %v40, %v227
    %v229 = vpop.f32.mrf.mxu0
    %230 = vmatprep.mubr.f32.mxu0 0.0
    %231 = vmatmul.mubr.f32.gmra.mxu0 %v89
    %v232 = vpop.f32.mrf.mxu0
    %v233 = vadd.f32 %v40, %v232
    %v234 = vpop.f32.mrf.mxu0
    %235 = vdwg.mxu0
    %236 = vst [vmem:[#allocation2] sm:$0xff] %v158
    %237 = vst [vmem:[#allocation2 + $0x8] sm:$0xff] %v163
    %238 = vst [vmem:[#allocation2 + $0x10] sm:$0xff] %v168
    %239 = vst [vmem:[#allocation2 + $0x18] sm:$0xff] %v173
    %240 = vst [vmem:[#allocation2 + $0x20] sm:$0xff] %v178
    %241 = vst [vmem:[#allocation2 + $0x28] sm:$0xff] %v183
    %242 = vst [vmem:[#allocation2 + $0x30] sm:$0xff] %v188
    %243 = vst [vmem:[#allocation2 + $0x38] sm:$0xff] %v193
    %244 = vst [vmem:[#allocation2 + $0x40] sm:$0xff] %v198
    %245 = vst [vmem:[#allocation2 + $0x48] sm:$0xff] %v203
    %246 = vst [vmem:[#allocation2 + $0x50] sm:$0xff] %v208
    %247 = vst [vmem:[#allocation2 + $0x58] sm:$0xff] %v213
    %248 = vst [vmem:[#allocation2 + $0x60] sm:$0xff] %v218
    %249 = vst [vmem:[#allocation2 + $0x68] sm:$0xff] %v223
    %250 = vst [vmem:[#allocation2 + $0x70] sm:$0xff] %v228
    %251 = vst [vmem:[#allocation2 + $0x78] sm:$0xff] %v233
    // Predicated region
    $region14: #{tpu_custom_call.1} parent=1 // pred_check
      _
    $region15: #{tpu_custom_call.1} parent=1 // pred_check_branch
      %253 = sbr.rel (0) target = $region17
    $region16: #{tpu_custom_call.1} parent=1 // pred_region
      %s255 = ssub.s32 2048, 2048
      %256 = vsyncadd [#allocation3], %s255
      %s257 = sshll.u32 [#allocation2], 4
      %s258 = int_to_ptr.vmem [resolvable:$true] %s257
      %263 = dma.vmem_to_hbm [thread:$0]  %s258, 2048, %s3, [#allocation3], 128, 128, 8
    $region17: #{tpu_custom_call.1} parent=1 // pred_fallthru
      _
    // Predicated region
    $region18: #{tpu_custom_call.1} parent=1 // pred_check
      _
    $region19: #{tpu_custom_call.1} parent=1 // pred_check_branch
      %265 = sbr.rel (0) target = $region21
    $region20: #{tpu_custom_call.1} parent=1 // pred_region
      %266 = dma.done [#allocation3], 2048
    $region21: #{tpu_custom_call.1} parent=1 // pred_fallthru
      _
    %267 = vsyncpa [#allocation3], 1

</llo_original>
